<compile_context>
chip_gen: v7x
topology: tpu7x:2x2x1
jax: 0.10.0
libtpu: 0.0.40
codegen_flags: <defaults>
</compile_context>

<pallas_src>
import functools

import numpy as np
import jax
import jax.numpy as jnp
from jax import lax
from jax.experimental import pallas as pl
from jax.experimental.pallas import tpu as pltpu


def _dense_calc_kernel(x_ref, w_ref, out_ref, slab_ref, *, C, KH, KW, Kh, W,
                       training):
  """One grid step = Nb samples: normalize -> packed im2col -> one MXU matmul -> sigmoid."""
  cols = x_ref.shape[1]                                     # Nb * H * W lanes
  eps = jnp.float32(9e-08)

  x = x_ref[...]                                            # (C, cols) f32

  # ---- channel-wise L2 norm over the sublane (channel) axis ----
  norm = jnp.sqrt(jnp.sum(x * x, axis=0, keepdims=True))    # (1, cols)
  inv = 1.0 / (norm + eps)                                  # exact; negligible vs MXU work
  if not training:
    inv = inv * (norm > jnp.float32(0.09)).astype(jnp.float32)
  xn = x * inv                                              # (C, cols)

  # ---- horizontal im2col slab: KW lane-rolled copies packed densely ----
  # hslab[dj*C + c, p] = xn[c, p + dj].  Row KW*C is the constant 1.0 that
  # carries the conv bias through the matmul; the remaining filler rows are
  # also 1.0 (finite, zero-weighted).  Rolling a constant row is a no-op, so
  # the bias row survives the vertical rolls below unchanged.
  hparts = [xn if dj == 0 else pltpu.roll(xn, shift=cols - dj, axis=1)
            for dj in range(KW)]
  hparts.append(jnp.ones((Kh - KW * C, cols), jnp.float32))
  hslab = jnp.concatenate(hparts, axis=0)                   # (Kh, cols)

  # ---- vertical taps: roll the whole horizontal slab by di*W, aligned stores ----
  # slab[di*Kh + dj*C + c, n*HW + i*W + j] = xn[c, n*HW + (i+di)*W + (j+dj)].
  # Lane wrap-around only lands in conv positions i >= Ho or j >= Wo, which the
  # wrapper's nearest-neighbour gather never selects.
  for di in range(KH):
    blk = hslab if di == 0 else pltpu.roll(hslab, shift=cols - di * W, axis=1)
    slab_ref[di * Kh:(di + 1) * Kh, :] = blk

  # ---- 5x5 conv + bias as ONE MXU matmul, sigmoid epilogue, lane-dense store ----
  out_ref[...] = jax.nn.sigmoid(
      jnp.dot(w_ref[...], slab_ref[...], preferred_element_type=jnp.float32))


def neko_dense_calc_forward(feat, weight, bias, lw, lh, *, training=True,
                            samples_per_step=None):
  """feat: (N, C, H, W) f32; weight: (OC, C, 5, 5); bias: (OC,).

  Returns (N, OC, lh+2, lw+2) matching the PyTorch module's forward.
  """
  feat = jnp.asarray(feat, jnp.float32)
  N, C, H, W = feat.shape
  weight = np.asarray(weight, np.float32)
  OC, Cw, KH, KW = weight.shape
  assert Cw == C
  Ho, Wo = H - KH + 1, W - KW + 1
  Lh, Lw = lh + 2, lw + 2
  HW = H * W

  # ---- samples per grid step (primary tuning knob) ----
  if samples_per_step is None:
    # Amortize per-step overhead, but keep >= 4 parallel grid steps so v7x's
    # two TensorCores both get work; the cap keeps slab VMEM modest everywhere.
    Nb = max(1, min(32, -(-N // 4)))
  else:
    Nb = max(1, int(samples_per_step))
  G = -(-N // Nb)
  if G > 1 and (Nb * HW) % 128 != 0:
    # Block last dims must be multiples of 128 unless they span the full array.
    Nb, G = N, 1
  Npad = G * Nb

  # ---- packed im2col geometry ----
  # One horizontal-slab block holds all KW taps' channels plus a reserved
  # constant-1 (bias) row, padded up to a multiple of 8 sublanes.
  Kh = -(-(KW * C + 1) // 8) * 8
  K_total = KH * Kh

  # ---- host-side constant operands (glue, not hot path) ----
  # Weight row layout matches slab rows: row = di*Kh + dj*C + c.  The bias
  # rides the constant-1 row of the di=0 block; all other filler rows are 0.
  w_host = np.zeros((OC, K_total), np.float32)
  for di in range(KH):
    for dj in range(KW):
      w_host[:, di * Kh + dj * C:di * Kh + (dj + 1) * C] = weight[:, :, di, dj]
  w_host[:, KW * C] = np.asarray(bias, np.float32)
  w2d = jnp.asarray(w_host)

  # feat as a lane-dense (C, N*H*W) slab: channel rows, flattened batch*spatial lanes.
  xflat = jnp.transpose(feat, (1, 0, 2, 3)).reshape(C, N * HW)
  if Npad != N:
    # Padded samples are all-zero: norm = 0 -> xn stays exactly 0 (no NaN).
    xflat = jnp.pad(xflat, ((0, 0), (0, (Npad - N) * HW)))

  kernel = functools.partial(_dense_calc_kernel, C=C, KH=KH, KW=KW, Kh=Kh, W=W,
                             training=training)

  # Per-step VMEM footprint: slab scratch + double-buffered in/out blocks + weights.
  step_cols = Nb * HW
  vmem_bytes = 4 * (K_total * step_cols + 2 * C * step_cols
                    + 2 * OC * step_cols + 2 * OC * K_total)
  vmem_limit = int(min(max(2 * vmem_bytes + (2 << 20), 16 << 20), 56 << 20))

  dmap_flat = pl.pallas_call(
      kernel,
      out_shape=jax.ShapeDtypeStruct((OC, Npad * HW), jnp.float32),
      grid_spec=pltpu.PrefetchScalarGridSpec(
          num_scalar_prefetch=0,
          grid=(G,),
          in_specs=[
              pl.BlockSpec((C, Nb * HW), lambda b: (0, b)),         # feat columns
              pl.BlockSpec((OC, K_total), lambda b: (0, 0)),        # packed conv weights
          ],
          out_specs=pl.BlockSpec((OC, Nb * HW), lambda b: (0, b)),  # lane-dense dmap slab
          scratch_shapes=[pltpu.VMEM((K_total, Nb * HW), jnp.float32)],
      ),
      compiler_params=pltpu.CompilerParams(
          dimension_semantics=("parallel",),
          vmem_limit_bytes=vmem_limit),
  )(xflat, w2d)

  # ---- nearest-neighbour resize (PyTorch interpolate default mode) in XLA ----
  ih = np.minimum(np.floor(np.arange(Lh) * (Ho / Lh)), Ho - 1).astype(np.int64)
  iw = np.minimum(np.floor(np.arange(Lw) * (Wo / Lw)), Wo - 1).astype(np.int64)
  # Only valid conv positions may be gathered: positions with i >= Ho or
  # j >= Wo hold lane-wrap garbage (possibly from the neighbouring sample).
  assert ih.max() < Ho and iw.max() < Wo
  dmap = dmap_flat.reshape(OC, Npad, H, W)[:, :N]             # (OC, N, H, W)
  ndmap = dmap[:, :, ih][:, :, :, iw]                         # (OC, N, Lh, Lw)
  return jnp.transpose(ndmap, (1, 0, 2, 3))                   # (N, OC, Lh, Lw)


def _reference_forward(feat, weight, bias, lw, lh, *, training=True):
  """Pure-JAX reference mirroring the PyTorch module (f32-exact conv)."""
  feat = jnp.asarray(feat, jnp.float32)
  weight = jnp.asarray(weight, jnp.float32)
  bias = jnp.asarray(bias, jnp.float32)
  norm = jnp.sqrt(jnp.sum(feat * feat, axis=1, keepdims=True))
  x = feat / (norm + 9e-08)
  if not training:
    x = x * (norm > 0.09)
  dmap = lax.conv_general_dilated(x, weight, (1, 1), "VALID",
                                  dimension_numbers=("NCHW", "OIHW", "NCHW"),
                                  precision=lax.Precision.HIGHEST)
  dmap = jax.nn.sigmoid(dmap + bias[None, :, None, None])
  Ho, Wo = dmap.shape[2], dmap.shape[3]
  Lh, Lw = lh + 2, lw + 2
  ih = np.minimum(np.floor(np.arange(Lh) * (Ho / Lh)), Ho - 1).astype(np.int64)
  iw = np.minimum(np.floor(np.arange(Lw) * (Wo / Lw)), Wo - 1).astype(np.int64)
  return dmap[:, :, ih][:, :, :, iw]


if __name__ == "__main__":
  key = jax.random.PRNGKey(0)
  k_feat, k_w, k_b = jax.random.split(key, 3)

  N, C, H, W = 2, 4, 16, 16
  OC, KH, KW = 2, 5, 5
  lw, lh = 8, 8

  feat = jax.random.normal(k_feat, (N, C, H, W), jnp.float32)
  weight = 0.1 * jax.random.normal(k_w, (OC, C, KH, KW), jnp.float32)
  bias = 0.1 * jax.random.normal(k_b, (OC,), jnp.float32)

  # training branch (module default)
  out = jax.block_until_ready(
      neko_dense_calc_forward(feat, weight, bias, lw, lh, training=True))
  assert out.shape == (N, OC, lh + 2, lw + 2), out.shape
  ref = _reference_forward(feat, weight, bias, lw, lh, training=True)
  np.testing.assert_allclose(np.asarray(out), np.asarray(ref), rtol=1e-4, atol=1e-4)

  # eval branch (norm > 0.09 mask)
  out_e = jax.block_until_ready(
      neko_dense_calc_forward(feat, weight, bias, lw, lh, training=False))
  ref_e = _reference_forward(feat, weight, bias, lw, lh, training=False)
  np.testing.assert_allclose(np.asarray(out_e), np.asarray(ref_e), rtol=1e-4, atol=1e-4)

  # larger batch: exercises Nb > 1 (auto-batched grid) and zero-padded samples
  N2 = 10
  feat2 = jax.random.normal(jax.random.PRNGKey(1), (N2, C, H, W), jnp.float32)
  out2 = jax.block_until_ready(
      neko_dense_calc_forward(feat2, weight, bias, lw, lh, training=True))
  ref2 = _reference_forward(feat2, weight, bias, lw, lh, training=True)
  np.testing.assert_allclose(np.asarray(out2), np.asarray(ref2), rtol=1e-4, atol=1e-4)

  print("KERNEL_OK")
</pallas_src>

<mosaic_0001>
module attributes {stable_mosaic.version = 11 : i64} {
  func.func @_dense_calc_kernel(%arg0: i32, %arg1: memref<4x256xf32, #tpu.memory_space<vmem>>, %arg2: memref<2x120xf32, #tpu.memory_space<vmem>>, %arg3: memref<2x256xf32, #tpu.memory_space<vmem>>, %arg4: memref<120x256xf32, #tpu.memory_space<vmem>>) attributes {dimension_semantics = [#tpu.dimension_semantics<parallel>], iteration_bounds = array<i64: 2>, scalar_prefetch = 0 : i64, scratch_operands = 1 : i64, tpu.core_type = #tpu.core_type<tc>, window_params = [{transform_indices = @transform_0, window_bounds = array<i64: 4, 256>}, {pipeline_mode = #tpu.pipeline_mode<synchronous>, transform_indices = @transform_1, window_bounds = array<i64: 2, 120>}, {transform_indices = @transform_2, window_bounds = array<i64: 2, 256>}]} {
    %c0 = arith.constant 0 : index
    %c0_0 = arith.constant 0 : index
    %0 = vector.load %arg1[%c0, %c0_0] : memref<4x256xf32, #tpu.memory_space<vmem>>, vector<4x256xf32>
    %1 = arith.mulf %0, %0 : vector<4x256xf32>
    %cst = arith.constant dense<0.000000e+00> : vector<256xf32>
    %2 = vector.multi_reduction <add>, %1, %cst [0] : vector<4x256xf32> to vector<256xf32>
    %3 = vector.shape_cast %2 : vector<256xf32> to vector<1x256xf32>
    %4 = math.sqrt %3 : vector<1x256xf32>
    %cst_1 = arith.constant 9.000000e-08 : f32
    %5 = vector.broadcast %cst_1 : f32 to vector<1x256xf32>
    %6 = arith.addf %4, %5 : vector<1x256xf32>
    %cst_2 = arith.constant 1.000000e+00 : f32
    %7 = vector.broadcast %cst_2 : f32 to vector<1x256xf32>
    %8 = arith.divf %7, %6 : vector<1x256xf32>
    %9 = vector.broadcast %8 : vector<1x256xf32> to vector<4x256xf32>
    %10 = arith.mulf %0, %9 : vector<4x256xf32>
    %c255_i32 = arith.constant 255 : i32
    %11 = tpu.dynamic_rotate %10 by %c255_i32 dim 1 : vector<4x256xf32>, i32 -> vector<4x256xf32>
    %c254_i32 = arith.constant 254 : i32
    %12 = tpu.dynamic_rotate %10 by %c254_i32 dim 1 : vector<4x256xf32>, i32 -> vector<4x256xf32>
    %c253_i32 = arith.constant 253 : i32
    %13 = tpu.dynamic_rotate %10 by %c253_i32 dim 1 : vector<4x256xf32>, i32 -> vector<4x256xf32>
    %c252_i32 = arith.constant 252 : i32
    %14 = tpu.dynamic_rotate %10 by %c252_i32 dim 1 : vector<4x256xf32>, i32 -> vector<4x256xf32>
    %cst_3 = arith.constant 1.000000e+00 : f32
    %15 = vector.broadcast %cst_3 : f32 to vector<4x256xf32>
    %16 = tpu.concatenate %10, %11, %12, %13, %14, %15 in 0 : vector<4x256xf32>, vector<4x256xf32>, vector<4x256xf32>, vector<4x256xf32>, vector<4x256xf32>, vector<4x256xf32> -> vector<24x256xf32>
    %c0_4 = arith.constant 0 : index
    %c0_5 = arith.constant 0 : index
    %17 = vector.load %arg4[%c0_4, %c0_5] : memref<120x256xf32, #tpu.memory_space<vmem>>, vector<24x256xf32>
    tpu.vector_store %arg4[%c0_4, %c0_5], %16 {strides = array<i32>} : memref<120x256xf32, #tpu.memory_space<vmem>>, vector<24x256xf32>,
    %c240_i32 = arith.constant 240 : i32
    %18 = tpu.dynamic_rotate %16 by %c240_i32 dim 1 : vector<24x256xf32>, i32 -> vector<24x256xf32>
    %c24 = arith.constant 24 : index
    %c0_6 = arith.constant 0 : index
    %19 = vector.load %arg4[%c24, %c0_6] : memref<120x256xf32, #tpu.memory_space<vmem>>, vector<24x256xf32>
    tpu.vector_store %arg4[%c24, %c0_6], %18 {strides = array<i32>} : memref<120x256xf32, #tpu.memory_space<vmem>>, vector<24x256xf32>,
    %c224_i32 = arith.constant 224 : i32
    %20 = tpu.dynamic_rotate %16 by %c224_i32 dim 1 : vector<24x256xf32>, i32 -> vector<24x256xf32>
    %c48 = arith.constant 48 : index
    %c0_7 = arith.constant 0 : index
    %21 = vector.load %arg4[%c48, %c0_7] : memref<120x256xf32, #tpu.memory_space<vmem>>, vector<24x256xf32>
    tpu.vector_store %arg4[%c48, %c0_7], %20 {strides = array<i32>} : memref<120x256xf32, #tpu.memory_space<vmem>>, vector<24x256xf32>,
    %c208_i32 = arith.constant 208 : i32
    %22 = tpu.dynamic_rotate %16 by %c208_i32 dim 1 : vector<24x256xf32>, i32 -> vector<24x256xf32>
    %c72 = arith.constant 72 : index
    %c0_8 = arith.constant 0 : index
    %23 = vector.load %arg4[%c72, %c0_8] : memref<120x256xf32, #tpu.memory_space<vmem>>, vector<24x256xf32>
    tpu.vector_store %arg4[%c72, %c0_8], %22 {strides = array<i32>} : memref<120x256xf32, #tpu.memory_space<vmem>>, vector<24x256xf32>,
    %c192_i32 = arith.constant 192 : i32
    %24 = tpu.dynamic_rotate %16 by %c192_i32 dim 1 : vector<24x256xf32>, i32 -> vector<24x256xf32>
    %c96 = arith.constant 96 : index
    %c0_9 = arith.constant 0 : index
    %25 = vector.load %arg4[%c96, %c0_9] : memref<120x256xf32, #tpu.memory_space<vmem>>, vector<24x256xf32>
    tpu.vector_store %arg4[%c96, %c0_9], %24 {strides = array<i32>} : memref<120x256xf32, #tpu.memory_space<vmem>>, vector<24x256xf32>,
    %c0_10 = arith.constant 0 : index
    %c0_11 = arith.constant 0 : index
    %26 = vector.load %arg2[%c0_10, %c0_11] : memref<2x120xf32, #tpu.memory_space<vmem>>, vector<2x120xf32>
    %c0_12 = arith.constant 0 : index
    %c0_13 = arith.constant 0 : index
    %27 = vector.load %arg4[%c0_12, %c0_13] : memref<120x256xf32, #tpu.memory_space<vmem>>, vector<120x256xf32>
    %cst_14 = arith.constant dense<0.000000e+00> : vector<2x256xf32>
    %28 = tpu.matmul %26, %27, %cst_14 {dimension_numbers = #tpu.dot_dimension_numbers<[1], [0], [0], [1], [0, 0, 1, 1], [], []>} : vector<2x120xf32>, vector<120x256xf32>, vector<2x256xf32> -> vector<2x256xf32>
    %29 = arith.negf %28 : vector<2x256xf32>
    %30 = math.exp %29 : vector<2x256xf32>
    %cst_15 = arith.constant 1.000000e+00 : f32
    %31 = vector.broadcast %cst_15 : f32 to vector<2x256xf32>
    %32 = arith.addf %31, %30 : vector<2x256xf32>
    %33 = arith.divf %31, %32 : vector<2x256xf32>
    %c0_16 = arith.constant 0 : index
    %c0_17 = arith.constant 0 : index
    %34 = vector.load %arg3[%c0_16, %c0_17] : memref<2x256xf32, #tpu.memory_space<vmem>>, vector<2x256xf32>
    tpu.vector_store %arg3[%c0_16, %c0_17], %33 {strides = array<i32>} : memref<2x256xf32, #tpu.memory_space<vmem>>, vector<2x256xf32>,
    return
  }
  func.func @transform_0(%arg0: i32) -> (i32, i32) {
    %c0_i32 = arith.constant 0 : i32
    %c0_i32_0 = arith.constant 0 : i32
    return %c0_i32, %arg0 : i32, i32
  }
  func.func @transform_1(%arg0: i32) -> (i32, i32) {
    %c0_i32 = arith.constant 0 : i32
    %c0_i32_0 = arith.constant 0 : i32
    %c0_i32_1 = arith.constant 0 : i32
    return %c0_i32, %c0_i32_0 : i32, i32
  }
  func.func @transform_2(%arg0: i32) -> (i32, i32) {
    %c0_i32 = arith.constant 0 : i32
    %c0_i32_0 = arith.constant 0 : i32
    return %c0_i32, %arg0 : i32, i32
  }
}

</mosaic_0001>

<llo_original>
// kernel: tpu_custom_call.1
$region0: #{tpu_custom_call.1}
  #allocation0 [shape = 'u32[]', space=smem, size = 0x4, offset = 0x4, fixed_abs, tag = 'smem constant byte address 0x4 - core index']
  #allocation1 [shape = 'u32[144,128]{1,0:T(1,128)}', space=vmem, size = 0x12000, scoped, tag = 'internal scratch']
  #allocation2 [shape = 'f32[120,256]{1,0:T(8,128)}', space=vmem, size = 0x1e000, scoped, tag = 'scratch operand']
  %s0 = inlined_call_operand.hbm [shape: f32[4,512], index: 0, kind: input, shape index: {}]
  %s1 = inlined_call_operand.vmem [shape: f32[2,120], index: 1, kind: input, shape index: {}]
  %s2 = inlined_call_operand.hbm [shape: f32[2,512], index: 2, kind: output, shape index: {}]
  %s3 = sld [smem:[#allocation0]]
  $region45: #{tpu_custom_call.1} parent=0
    _
  %s5 = ssub.s32 1, %s3
  %s6 = scalar_select 0, %s5, %s3
  $region1: #{tpu_custom_call.1} parent=0
    #allocation3 [shape = 'u8[8192]{0}', space=vmem, size = 0x2000, scoped, tag = 'input window, operand 0']
    #allocation4 [shape = 's32[2]{0}', space=sflag, size = 0x8, scoped, tag = 'scoped memory for tpu_custom_call.1']
    #allocation5 [shape = 's32[2]{0}', space=sflag, size = 0x8, scoped, tag = 'scoped memory for tpu_custom_call.1']
    #allocation6 [shape = 'u8[4096]{0}', space=vmem, size = 0x1000, scoped, tag = 'output window, operand 0']
    %7 = vsyncpa [#allocation4], 0
    %s8 = scalar_lea.sflag [#allocation4], 1
    %9 = vsyncpa %s8, 0
    %10 = vsyncpa [#allocation5], 0
    %s11 = scalar_lea.sflag [#allocation5], 1
    %12 = vsyncpa %s11, 0
    loop: start=0, step=1, limit=4
    $region2: #{tpu_custom_call.1} parent=1 // loop_pre_header
      _
    $region3: #{tpu_custom_call.1} parent=1 // loop_header
      %s14 = sphi 0, %s18
      %p15 = scmp.ge.s32.totalorder %s14, 4
      %s24 = sphi 0, %s26
      %s27 = sphi 0, %s24
      %s28 = sphi 0, %s27
      %s44 = sphi 0, %s28
      %s48 = sphi 0, %s48
      %s50 = sphi 0, %s48
      %s51 = sphi 0, %s50
      %s65 = sphi 0, %s51
      %s71 = sphi 0, %s73
      %s74 = sphi 0, %s71
      %s75 = sphi 0, %s74
      %s91 = sphi 0, %s75
    $region4: #{tpu_custom_call.1} parent=1 // loop_header_branch
      %17 = sbr.rel (%p15) target = $region8
    $region5: #{tpu_custom_call.1} parent=1 // loop_body
      %s19 = ssub.s32 %s14, 1
      %s20 = ssub.s32 %s14, 2
      %s21 = sadd.s32 %s14, 1
      %s22 = ssub.s32 %s14, %s21
      %p23 = scmp.eq.s32.totalorder %s22, 0
      %s25 = sadd.s32 %s24, 1
      %s26 = scalar_select %p23, %s24, %s25
      %p29 = pneg %p23
      %p30 = scmp.eq.s32.totalorder %s14, 1
      %p31 = por %p29, %p30
      %p32 = scmp.ne.s32.totalorder %s24, %s27
      %p33 = scmp.eq.s32.totalorder %s14, 0
      %p34 = por %p32, %p33
      %p35 = scmp.ne.s32.totalorder %s24, %s27
      %p36 = scmp.eq.s32.totalorder %s19, 1
      %p37 = por %p35, %p36
      %p38 = scmp.ne.s32.totalorder %s27, %s28
      %p39 = scmp.eq.s32.totalorder %s19, 0
      %p40 = por %p38, %p39
      %p41 = scmp.ne.s32.totalorder %s27, %s28
      %p42 = scmp.eq.s32.totalorder %s20, 1
      %p43 = por %p41, %p42
      %p45 = scmp.ne.s32.totalorder %s28, %s44
      %p46 = scmp.eq.s32.totalorder %s20, 0
      %p47 = por %p45, %p46
      %s49 = sadd.s32 %s48, 1
      %p52 = scmp.eq.s32.totalorder %s14, 1
      %p53 = scmp.ne.s32.totalorder %s48, %s50
      %p54 = scmp.eq.s32.totalorder %s14, 0
      %p55 = por %p53, %p54
      %p56 = scmp.ne.s32.totalorder %s48, %s50
      %p57 = scmp.eq.s32.totalorder %s19, 1
      %p58 = por %p56, %p57
      %p59 = scmp.ne.s32.totalorder %s50, %s51
      %p60 = scmp.eq.s32.totalorder %s19, 0
      %p61 = por %p59, %p60
      %p62 = scmp.ne.s32.totalorder %s50, %s51
      %p63 = scmp.eq.s32.totalorder %s20, 1
      %p64 = por %p62, %p63
      %p66 = scmp.ne.s32.totalorder %s51, %s65
      %p67 = scmp.eq.s32.totalorder %s20, 0
      %p68 = por %p66, %p67
      %s69 = ssub.s32 %s14, %s21
      %p70 = scmp.eq.s32.totalorder %s69, 0
      %s72 = sadd.s32 %s71, 1
      %s73 = scalar_select %p70, %s71, %s72
      %p76 = pneg %p70
      %p77 = scmp.eq.s32.totalorder %s14, 1
      %p78 = por %p76, %p77
      %p79 = scmp.ne.s32.totalorder %s71, %s74
      %p80 = scmp.eq.s32.totalorder %s14, 0
      %p81 = por %p79, %p80
      %p82 = scmp.ne.s32.totalorder %s71, %s74
      %p83 = scmp.eq.s32.totalorder %s19, 1
      %p84 = por %p82, %p83
      %p85 = scmp.ne.s32.totalorder %s74, %s75
      %p86 = scmp.eq.s32.totalorder %s19, 0
      %p87 = por %p85, %p86
      %p88 = scmp.ne.s32.totalorder %s74, %s75
      %p89 = scmp.eq.s32.totalorder %s20, 1
      %p90 = por %p88, %p89
      %p92 = scmp.ne.s32.totalorder %s75, %s91
      %p93 = scmp.eq.s32.totalorder %s20, 0
      %p94 = por %p92, %p93
      %p95 = scmp.le.s32.totalorder 1, %s14
      %p96 = scmp.lt.s32.totalorder %s14, 3
      %p97 = pnand %p95, %p96
      %p98 = pneg %p97
      // Predicated region
      $region9: #{tpu_custom_call.1} parent=5 // pred_check
        _
      $region10: #{tpu_custom_call.1} parent=5 // pred_check_branch
        %100 = sbr.rel (%p97) target = $region12
      $region11: #{tpu_custom_call.1} parent=5 // pred_region
        %s101 = ssub.s32 %s14, 1
        // Predicated region
        $region13: #{tpu_custom_call.1} parent=11 // pred_check
          %p102 = pneg %p61
        $region14: #{tpu_custom_call.1} parent=11 // pred_check_branch
          %104 = sbr.rel (%p102) target = $region16
        $region15: #{tpu_custom_call.1} parent=11 // pred_region
          _
        $region16: #{tpu_custom_call.1} parent=11 // pred_fallthru
          _
      $region12: #{tpu_custom_call.1} parent=5 // pred_fallthru
        _
      %p105 = scmp.lt.s32.totalorder %s14, 2
      // Predicated region
      $region17: #{tpu_custom_call.1} parent=5 // pred_check
        %p106 = pneg %p105
      $region18: #{tpu_custom_call.1} parent=5 // pred_check_branch
        %108 = sbr.rel (%p106) target = $region20
      $region19: #{tpu_custom_call.1} parent=5 // pred_region
        // Predicated region
        $region21: #{tpu_custom_call.1} parent=19 // pred_check
          %p109 = pneg %p34
        $region22: #{tpu_custom_call.1} parent=19 // pred_check_branch
          %111 = sbr.rel (%p109) target = $region24
        $region23: #{tpu_custom_call.1} parent=19 // pred_region
          %s112 = sand.u32 %s24, 1
          %s113 = scalar_lea.sflag [#allocation4], %s112
          %s114 = sand.u32 %s24, 1
          %s115 = smul.addr %s114, 8
          %s116 = scalar_lea.vmem [#allocation3], %s115
          %s117 = smul.u32 2, %s14
          %s119 = ssub.s32 128, 128
          %120 = vsyncadd %s113, %s119
          %s121 = smul.addr %s117, 64
          %s122 = scalar_lea.hbm %s0, %s121
          %s124 = sshll.u32 %s116, 4
          %s125 = int_to_ptr.vmem [resolvable:$true] %s124
          %127 = dma.hbm_to_vmem [thread:$0]  %s122, 128, %s125, %s113
        $region24: #{tpu_custom_call.1} parent=19 // pred_fallthru
          _
      $region20: #{tpu_custom_call.1} parent=5 // pred_fallthru
        _
      %p128 = scmp.le.s32.totalorder 1, %s14
      %p129 = scmp.lt.s32.totalorder %s14, 3
      %p130 = pnand %p128, %p129
      %p131 = pneg %p130
      // Predicated region
      $region25: #{tpu_custom_call.1} parent=5 // pred_check
        _
      $region26: #{tpu_custom_call.1} parent=5 // pred_check_branch
        %133 = sbr.rel (%p130) target = $region28
      $region27: #{tpu_custom_call.1} parent=5 // pred_region
        %s134 = ssub.s32 %s14, 1
        %s135 = sand.u32 %s27, 1
        %s136 = scalar_lea.sflag [#allocation4], %s135
        %s137 = sand.u32 %s27, 1
        %s138 = smul.addr %s137, 8
        %s139 = scalar_lea.vmem [#allocation3], %s138
        // Predicated region
        $region29: #{tpu_custom_call.1} parent=27 // pred_check
          %p140 = pneg %p40
        $region30: #{tpu_custom_call.1} parent=27 // pred_check_branch
          %142 = sbr.rel (%p140) target = $region32
        $region31: #{tpu_custom_call.1} parent=27 // pred_region
          %143 = dma.done %s136, 128
        $region32: #{tpu_custom_call.1} parent=27 // pred_fallthru
          _
        %s144 = sand.u32 %s27, 1
        %s145 = scalar_lea.sflag [#allocation4], %s144
        %s146 = sand.u32 %s27, 1
        %s147 = smul.addr %s146, 8
        %s148 = scalar_lea.vmem [#allocation3], %s147
        %p149 = pneg %p40
        %p150 = pneg %p37
        %p151 = pneg %p61
        %p152 = pneg %p58
        %p153 = pneg %p87
        %p154 = pneg %p84
        %s155 = sand.u32 %s74, 1
        %s156 = scalar_lea.sflag [#allocation5], %s155
        %s157 = sand.u32 %s74, 1
        %s158 = smul.addr %s157, 4
        %s159 = scalar_lea.vmem [#allocation6], %s158
        %s160 = smul.u32 2, %s19
        %s161 = smul.u32 2, %s19
        %v162 = vld [vmem:[%s139] sm:$0xff]
        %v163 = vmul.f32 %v162, %v162
        %v165 = vcombine.high %v163, %v163
        %vm167 = vcmask 1043456
        %v168 = vsel %vm167, %v163, 0.0
        %v169 = vrot.slane %v168, 4
        %v170 = vadd.f32 %v168, %v169
        %v171 = vrot.slane %v170, 2
        %v172 = vadd.f32 %v170, %v171
        %v173 = vrot.slane %v172, 1
        %v174 = vadd.f32 %v172, %v173
        %v175 = vsel %vm167, %v165, 0.0
        %v176 = vrot.slane %v175, 4
        %v177 = vadd.f32 %v175, %v176
        %v178 = vrot.slane %v177, 2
        %v179 = vadd.f32 %v177, %v178
        %v180 = vrot.slane %v179, 1
        %v181 = vadd.f32 %v179, %v180
        %v182 = vrsqrt.pop %v174
        %v183 = vmul.f32 %v174, %v182
        %vm184 = vcmp.eq.f32.partialorder %v174, inf
        %v185 = vsel %vm184, %v174, %v183
        %vm186 = vcmp.eq.f32.partialorder %v174, 0.0
        %v187 = vand.u32 %v174, 2147483648
        %v188 = vsel %vm186, %v187, %v185
        %v189 = vrsqrt.pop %v181
        %v190 = vmul.f32 %v181, %v189
        %vm191 = vcmp.eq.f32.partialorder %v181, inf
        %v192 = vsel %vm191, %v181, %v190
        %vm193 = vcmp.eq.f32.partialorder %v181, 0.0
        %v194 = vand.u32 %v181, 2147483648
        %v195 = vsel %vm193, %v194, %v192
        %v196 = vadd.f32 %v188, 9e-08
        %v197 = vadd.f32 %v195, 9e-08
        %v198 = vrcp.pop %v196
        %v199 = vmul.f32 1.0, %v198
        %v200 = vrcp.pop %v197
        %v201 = vmul.f32 1.0, %v200
        %v204 = vcombine.low %v199, %v201
        %v206 = vmul.f32 %v162, %v204
        %v208 = vcombine.high %v206, %v206
        %210 = vrot.lane.b32.xlu0 %v206, 127
        %v211 = vpop.permute.xlu0 %210
        %212 = vrot.lane.b32.xlu0 %v208, 127
        %v213 = vpop.permute.xlu0 %212
        %v214 = vlaneseq
        %v215 = vand.u32 %v214, 127
        %vm216 = vcmp.lt.s32.totalorder %v215, 127
        %v217 = vsel %vm216, %v211, %v213
        %v218 = vsel %vm216, %v213, %v211
        %219 = vrot.lane.b32.xlu0 %v206, 126
        %v220 = vpop.permute.xlu0 %219
        %221 = vrot.lane.b32.xlu0 %v208, 126
        %v222 = vpop.permute.xlu0 %221
        %vm223 = vcmp.lt.s32.totalorder %v215, 126
        %v224 = vsel %vm223, %v220, %v222
        %v225 = vsel %vm223, %v222, %v220
        %226 = vrot.lane.b32.xlu0 %v206, 125
        %v227 = vpop.permute.xlu0 %226
        %228 = vrot.lane.b32.xlu0 %v208, 125
        %v229 = vpop.permute.xlu0 %228
        %vm230 = vcmp.lt.s32.totalorder %v215, 125
        %v231 = vsel %vm230, %v227, %v229
        %v232 = vsel %vm230, %v229, %v227
        %233 = vrot.lane.b32.xlu0 %v206, 124
        %v234 = vpop.permute.xlu0 %233
        %235 = vrot.lane.b32.xlu0 %v208, 124
        %v236 = vpop.permute.xlu0 %235
        %vm237 = vcmp.lt.s32.totalorder %v215, 124
        %v238 = vsel %vm237, %v234, %v236
        %v239 = vsel %vm237, %v236, %v234
        %v242 = vrot.slane %v217, 4
        %v243 = vrot.slane %v218, 4
        %v248 = vrot.slane %v231, 4
        %v249 = vrot.slane %v232, 4
        %v252 = vsel %vm167, %v206, %v242
        %v253 = vsel %vm167, %v208, %v243
        %v254 = vsel %vm167, %v224, %v248
        %v255 = vsel %vm167, %v225, %v249
        %v256 = vsel %vm167, %v238, 1.0
        %v257 = vsel %vm167, %v239, 1.0
        %258 = vst [vmem:[#allocation2] sm:$0xff] %v252
        %259 = vst [vmem:[#allocation2 + $0x8] sm:$0xff] %v253
        %260 = vst [vmem:[#allocation2 + $0x10] sm:$0xff] %v254
        %261 = vst [vmem:[#allocation2 + $0x18] sm:$0xff] %v255
        %262 = vst [vmem:[#allocation2 + $0x20] sm:$0xff] %v256
        %263 = vst [vmem:[#allocation2 + $0x28] sm:$0xff] %v257
        %264 = vrot.lane.b32.xlu0 %v252, 112
        %v265 = vpop.permute.xlu0 %264
        %266 = vrot.lane.b32.xlu0 %v254, 112
        %v267 = vpop.permute.xlu0 %266
        %268 = vrot.lane.b32.xlu0 %v256, 112
        %v269 = vpop.permute.xlu0 %268
        %270 = vrot.lane.b32.xlu0 %v253, 112
        %v271 = vpop.permute.xlu0 %270
        %272 = vrot.lane.b32.xlu0 %v255, 112
        %v273 = vpop.permute.xlu0 %272
        %274 = vrot.lane.b32.xlu0 %v257, 112
        %v275 = vpop.permute.xlu0 %274
        %vm276 = vcmp.lt.s32.totalorder %v215, 112
        %v277 = vsel %vm276, %v265, %v271
        %v278 = vsel %vm276, %v267, %v273
        %v279 = vsel %vm276, %v269, %v275
        %v280 = vsel %vm276, %v271, %v265
        %v281 = vsel %vm276, %v273, %v267
        %v282 = vsel %vm276, %v275, %v269
        %283 = vst [vmem:[#allocation2 + $0x30] sm:$0xff] %v277
        %284 = vst [vmem:[#allocation2 + $0x38] sm:$0xff] %v280
        %285 = vst [vmem:[#allocation2 + $0x40] sm:$0xff] %v278
        %286 = vst [vmem:[#allocation2 + $0x48] sm:$0xff] %v281
        %287 = vst [vmem:[#allocation2 + $0x50] sm:$0xff] %v279
        %288 = vst [vmem:[#allocation2 + $0x58] sm:$0xff] %v282
        %289 = vrot.lane.b32.xlu0 %v252, 96
        %v290 = vpop.permute.xlu0 %289
        %291 = vrot.lane.b32.xlu0 %v254, 96
        %v292 = vpop.permute.xlu0 %291
        %293 = vrot.lane.b32.xlu0 %v256, 96
        %v294 = vpop.permute.xlu0 %293
        %295 = vrot.lane.b32.xlu0 %v253, 96
        %v296 = vpop.permute.xlu0 %295
        %297 = vrot.lane.b32.xlu0 %v255, 96
        %v298 = vpop.permute.xlu0 %297
        %299 = vrot.lane.b32.xlu0 %v257, 96
        %v300 = vpop.permute.xlu0 %299
        %vm301 = vcmp.lt.s32.totalorder %v215, 96
        %v302 = vsel %vm301, %v290, %v296
        %v303 = vsel %vm301, %v292, %v298
        %v304 = vsel %vm301, %v294, %v300
        %v305 = vsel %vm301, %v296, %v290
        %v306 = vsel %vm301, %v298, %v292
        %v307 = vsel %vm301, %v300, %v294
        %308 = vst [vmem:[#allocation2 + $0x60] sm:$0xff] %v302
        %309 = vst [vmem:[#allocation2 + $0x68] sm:$0xff] %v305
        %310 = vst [vmem:[#allocation2 + $0x70] sm:$0xff] %v303
        %311 = vst [vmem:[#allocation2 + $0x78] sm:$0xff] %v306
        %312 = vst [vmem:[#allocation2 + $0x80] sm:$0xff] %v304
        %313 = vst [vmem:[#allocation2 + $0x88] sm:$0xff] %v307
        %314 = vrot.lane.b32.xlu0 %v252, 80
        %v315 = vpop.permute.xlu0 %314
        %316 = vrot.lane.b32.xlu0 %v254, 80
        %v317 = vpop.permute.xlu0 %316
        %318 = vrot.lane.b32.xlu0 %v256, 80
        %v319 = vpop.permute.xlu0 %318
        %320 = vrot.lane.b32.xlu0 %v253, 80
        %v321 = vpop.permute.xlu0 %320
        %322 = vrot.lane.b32.xlu0 %v255, 80
        %v323 = vpop.permute.xlu0 %322
        %324 = vrot.lane.b32.xlu0 %v257, 80
        %v325 = vpop.permute.xlu0 %324
        %vm326 = vcmp.lt.s32.totalorder %v215, 80
        %v327 = vsel %vm326, %v315, %v321
        %v328 = vsel %vm326, %v317, %v323
        %v329 = vsel %vm326, %v319, %v325
        %v330 = vsel %vm326, %v321, %v315
        %v331 = vsel %vm326, %v323, %v317
        %v332 = vsel %vm326, %v325, %v319
        %333 = vst [vmem:[#allocation2 + $0x90] sm:$0xff] %v327
        %334 = vst [vmem:[#allocation2 + $0x98] sm:$0xff] %v330
        %335 = vst [vmem:[#allocation2 + $0xa0] sm:$0xff] %v328
        %336 = vst [vmem:[#allocation2 + $0xa8] sm:$0xff] %v331
        %337 = vst [vmem:[#allocation2 + $0xb0] sm:$0xff] %v329
        %338 = vst [vmem:[#allocation2 + $0xb8] sm:$0xff] %v332
        %339 = vrot.lane.b32.xlu0 %v252, 64
        %v340 = vpop.permute.xlu0 %339
        %341 = vrot.lane.b32.xlu0 %v254, 64
        %v342 = vpop.permute.xlu0 %341
        %343 = vrot.lane.b32.xlu0 %v256, 64
        %v344 = vpop.permute.xlu0 %343
        %345 = vrot.lane.b32.xlu0 %v253, 64
        %v346 = vpop.permute.xlu0 %345
        %347 = vrot.lane.b32.xlu0 %v255, 64
        %v348 = vpop.permute.xlu0 %347
        %349 = vrot.lane.b32.xlu0 %v257, 64
        %v350 = vpop.permute.xlu0 %349
        %vm351 = vcmp.lt.s32.totalorder %v215, 64
        %v352 = vsel %vm351, %v340, %v346
        %v353 = vsel %vm351, %v342, %v348
        %v354 = vsel %vm351, %v344, %v350
        %v355 = vsel %vm351, %v346, %v340
        %v356 = vsel %vm351, %v348, %v342
        %v357 = vsel %vm351, %v350, %v344
        %358 = vst [vmem:[#allocation2 + $0xc0] sm:$0xff] %v352
        %359 = vst [vmem:[#allocation2 + $0xc8] sm:$0xff] %v355
        %360 = vst [vmem:[#allocation2 + $0xd0] sm:$0xff] %v353
        %361 = vst [vmem:[#allocation2 + $0xd8] sm:$0xff] %v356
        %362 = vst [vmem:[#allocation2 + $0xe0] sm:$0xff] %v354
        %363 = vst [vmem:[#allocation2 + $0xe8] sm:$0xff] %v357
        %v364 = vld [vmem:[%s1] sm:$0x3]
        %v365 = vld [vmem:[#allocation2] sm:$0xff]
        %v366 = vld [vmem:[#allocation2 + $0x8] sm:$0xff]
        %v367 = vld [vmem:[#allocation2 + $0x10] sm:$0xff]
        %v368 = vld [vmem:[#allocation2 + $0x18] sm:$0xff]
        %v369 = vld [vmem:[#allocation2 + $0x20] sm:$0xff]
        %v370 = vld [vmem:[#allocation2 + $0x28] sm:$0xff]
        %v371 = vld [vmem:[#allocation2 + $0x30] sm:$0xff]
        %v372 = vld [vmem:[#allocation2 + $0x38] sm:$0xff]
        %v373 = vld [vmem:[#allocation2 + $0x40] sm:$0xff]
        %v374 = vld [vmem:[#allocation2 + $0x48] sm:$0xff]
        %v375 = vld [vmem:[#allocation2 + $0x50] sm:$0xff]
        %v376 = vld [vmem:[#allocation2 + $0x58] sm:$0xff]
        %v377 = vld [vmem:[#allocation2 + $0x60] sm:$0xff]
        %v378 = vld [vmem:[#allocation2 + $0x68] sm:$0xff]
        %v379 = vld [vmem:[#allocation2 + $0x70] sm:$0xff]
        %v380 = vld [vmem:[#allocation2 + $0x78] sm:$0xff]
        %v381 = vld [vmem:[#allocation2 + $0x80] sm:$0xff]
        %v382 = vld [vmem:[#allocation2 + $0x88] sm:$0xff]
        %v383 = vld [vmem:[#allocation2 + $0x90] sm:$0xff]
        %v384 = vld [vmem:[#allocation2 + $0x98] sm:$0xff]
        %v385 = vld [vmem:[#allocation2 + $0xa0] sm:$0xff]
        %v386 = vld [vmem:[#allocation2 + $0xa8] sm:$0xff]
        %v387 = vld [vmem:[#allocation2 + $0xb0] sm:$0xff]
        %v388 = vld [vmem:[#allocation2 + $0xb8] sm:$0xff]
        %v389 = vld [vmem:[#allocation2 + $0xc0] sm:$0xff]
        %v390 = vld [vmem:[#allocation2 + $0xc8] sm:$0xff]
        %v391 = vld [vmem:[#allocation2 + $0xd0] sm:$0xff]
        %v392 = vld [vmem:[#allocation2 + $0xd8] sm:$0xff]
        %v393 = vld [vmem:[#allocation2 + $0xe0] sm:$0xff]
        %v394 = vld [vmem:[#allocation2 + $0xe8] sm:$0xff]
        %vm395 = vcmask 982016
        %v397 = vsel %vm395, %v364, 0
        %399 = vmatprep.subr.mxu0 %v366
        %400 = vmatpush1.msra.mxu0 %v365
        %401 = vmatprep.subr.mxu0 %v368
        %402 = vmatpush1.msra.mxu0 %v367
        %403 = vmatprep.subr.mxu0 %v370
        %404 = vmatpush1.msra.mxu0 %v369
        %405 = vmatprep.subr.mxu0 %v372
        %406 = vmatpush1.msra.mxu0 %v371
        %407 = vmatprep.subr.mxu0 %v374
        %408 = vmatpush1.msra.mxu0 %v373
        %409 = vmatprep.subr.mxu0 %v376
        %410 = vmatpush1.msra.mxu0 %v375
        %411 = vmatprep.subr.mxu0 %v378
        %412 = vmatpush1.msra.mxu0 %v377
        %413 = vmatprep.subr.mxu0 %v380
        %414 = vmatpush1.msra.mxu0 %v379
        %415 = vmatprep.subr.mxu0 %v382
        %416 = vmatpush1.msra.mxu0 %v381
        %417 = vmatprep.subr.mxu0 %v384
        %418 = vmatpush1.msra.mxu0 %v383
        %419 = vmatprep.subr.mxu0 %v386
        %420 = vmatpush1.msra.mxu0 %v385
        %421 = vmatprep.subr.mxu0 %v388
        %422 = vmatpush1.msra.mxu0 %v387
        %423 = vmatprep.subr.mxu0 %v390
        %424 = vmatpush1.msra.mxu0 %v389
        %425 = vmatprep.subr.mxu0 %v392
        %426 = vmatpush1.msra.mxu0 %v391
        %427 = vmatprep.subr.mxu0 %v394
        %428 = vmatpush1.msra.mxu0 %v393
        %429 = vmatprep.subr.mxu0 0.0
        %430 = vmatpush1.msra.mxu0 0.0
        %431 = vmatprep.subr.mxu0 0.0
        %432 = vmatpush1.msra.mxu0 0.0
        %433 = vmatprep.subr.mxu0 0.0
        %434 = vmatpush1.msra.mxu0 0.0
        %435 = vmatprep.subr.mxu0 0.0
        %436 = vmatpush1.msra.mxu0 0.0
        %437 = vmatprep.subr.mxu0 0.0
        %438 = vmatpush1.msra.mxu0 0.0
        %439 = vmatprep.subr.mxu0 0.0
        %440 = vmatpush1.msra.mxu0 0.0
        %441 = vmatprep.subr.mxu0 0.0
        %442 = vmatpush1.msra.mxu0 0.0
        %443 = vmatprep.subr.mxu0 0.0
        %444 = vmatpush1.msra.mxu0 0.0
        %445 = vmatprep.subr.mxu0 0.0
        %446 = vmatpush1.msra.mxu0 0.0
        %447 = vmatprep.subr.mxu0 0.0
        %448 = vmatpush1.msra.mxu0 0.0
        %449 = vmatprep.subr.mxu0 0.0
        %450 = vmatpush1.msra.mxu0 0.0
        %451 = vmatprep.subr.mxu0 0.0
        %452 = vmatpush1.msra.mxu0 0.0
        %453 = vmatprep.subr.mxu0 0.0
        %454 = vmatpush1.msra.mxu0 0.0
        %455 = vmatprep.subr.mxu0 0.0
        %456 = vmatpush1.msra.mxu0 0.0
        %457 = vmatprep.subr.mxu0 0.0
        %458 = vmatpush1.msra.mxu0 0.0
        %459 = vmatprep.subr.mxu0 0.0
        %460 = vmatpush1.msra.mxu0 0.0
        %461 = vmatprep.subr.mxu0 0.0
        %462 = vmatpush1.msra.mxu0 0.0
        %463 = vmatprep.mubr.f32.mxu0 0.0
        %464 = vmatmul.mubr.f32.gmra.mrb[0].mxu0 %v397
        %v465 = vpop.f32.mrb[0].mxu0
        %v466 = vadd.f32 0.0, %v465
        %v467 = vpop.f32.mrb[0].mxu0
        %v468 = vadd.f32 0.0, %v467
        %469 = vdwg.mxu0
        %v470 = vxor.u32 %v466, 2147483648
        %v471 = vxor.u32 %v468, 2147483648
        %v472 = vmul.f32 %v470, 1.442695
        %v473 = vpow.pop %v472
        %v474 = vmul.f32 %v471, 1.442695
        %v475 = vpow.pop %v474
        %v476 = vadd.f32 %v473, 1.0
        %v477 = vadd.f32 %v475, 1.0
        %v478 = vrcp.pop %v476
        %v479 = vmul.f32 1.0, %v478
        %v480 = vrcp.pop %v477
        %v481 = vmul.f32 1.0, %v480
        %v484 = vcombine.low %v479, %v481
        %v486 = vunpack.c.l.s4 1983009808
        %v487 = vunpack.c.0.s8 %v486
        %v488 = vlaneseq
        %v489 = vshrl.u32 %v488, 7
        %v490 = vsub.s32 %v487, %v489
        %v491 = vrot.slane %v484, %v490
        %493 = vst [vmem:[%s159] sm:$0xf] %v491
        %s494 = sand.u32 %s74, 1
        %s495 = scalar_lea.sflag [#allocation5], %s494
        %s496 = sand.u32 %s74, 1
        %s497 = smul.addr %s496, 4
        %s498 = scalar_lea.vmem [#allocation6], %s497
        // Predicated region
        $region33: #{tpu_custom_call.1} parent=27 // pred_check
          %p499 = pneg %p84
        $region34: #{tpu_custom_call.1} parent=27 // pred_check_branch
          %501 = sbr.rel (%p499) target = $region36
        $region35: #{tpu_custom_call.1} parent=27 // pred_region
          %s502 = smul.u32 2, %s19
          %s504 = ssub.s32 64, 64
          %505 = vsyncadd %s495, %s504
          %s506 = smul.addr %s502, 32
          %s507 = scalar_lea.hbm %s2, %s506
          %s509 = sshll.u32 %s498, 4
          %s510 = int_to_ptr.vmem [resolvable:$true] %s509
          %512 = dma.vmem_to_hbm [thread:$0]  %s510, 64, %s507, %s495
        $region36: #{tpu_custom_call.1} parent=27 // pred_fallthru
          _
      $region28: #{tpu_custom_call.1} parent=5 // pred_fallthru
        _
      %p513 = scmp.le.s32.totalorder 2, %s14
      // Predicated region
      $region37: #{tpu_custom_call.1} parent=5 // pred_check
        %p514 = pneg %p513
      $region38: #{tpu_custom_call.1} parent=5 // pred_check_branch
        %516 = sbr.rel (%p514) target = $region40
      $region39: #{tpu_custom_call.1} parent=5 // pred_region
        %s517 = ssub.s32 %s14, 2
        // Predicated region
        $region41: #{tpu_custom_call.1} parent=39 // pred_check
          %p518 = pneg %p90
        $region42: #{tpu_custom_call.1} parent=39 // pred_check_branch
          %520 = sbr.rel (%p518) target = $region44
        $region43: #{tpu_custom_call.1} parent=39 // pred_region
          %s521 = sand.u32 %s75, 1
          %s522 = scalar_lea.sflag [#allocation5], %s521
          %s523 = sand.u32 %s75, 1
          %s524 = smul.addr %s523, 4
          %s525 = scalar_lea.vmem [#allocation6], %s524
          %526 = dma.done %s522, 64
        $region44: #{tpu_custom_call.1} parent=39 // pred_fallthru
          _
      $region40: #{tpu_custom_call.1} parent=5 // pred_fallthru
        _
    $region6: #{tpu_custom_call.1} parent=1 // loop_footer
      %s18 = sadd.s32 1, %s14
    $region7: #{tpu_custom_call.1} parent=1 // loop_footer_branch
      %13 = sbr.rel target = $region3
    $region8: #{tpu_custom_call.1} parent=1 // loop_exit
      _
    %527 = vsyncpa [#allocation4], 1
    %s528 = scalar_lea.sflag [#allocation4], 1
    %529 = vsyncpa %s528, 1
    %530 = vsyncpa [#allocation5], 1
    %s531 = scalar_lea.sflag [#allocation5], 1
    %532 = vsyncpa %s531, 1

</llo_original>
